<compile_context>
chip_gen: v7x
topology: tpu7x:2x2x1
jax: 0.10.0
libtpu: 0.0.40
codegen_flags: <defaults>
</compile_context>

<pallas_src>
import math

import jax
import jax.numpy as jnp
from jax.experimental import pallas as pl
from jax.experimental.pallas import tpu as pltpu


# ---------------------------------------------------------------------------
# Padding / output-length helpers (mirror the PyTorch module exactly)
# ---------------------------------------------------------------------------
def get_P(seq_len: int, kernel_size: int, stride: int) -> int:
    if seq_len < kernel_size:
        return kernel_size - seq_len
    return (stride - (seq_len - kernel_size) % stride) % stride


# ---------------------------------------------------------------------------
# Host-side: fold (replicate right-pad -> VALID strided conv -> +bias) of one layer
# into a dense operator acting on rows (ic*in_len + l), lanes = samples:
#     out[oc*N + j, :] = sum_{ic,l} T[oc*N + j, ic*in_len + l] * h[ic*in_len + l, :]
#                        + bias[oc]
# ---------------------------------------------------------------------------
def build_layer_operator(w, b, in_len: int, stride: int):
    Cout, Cin, K = w.shape
    P = get_P(in_len, K, stride)
    n_out = (in_len + P - K) // stride + 1
    # source position for output j, tap k; clamping realizes the replicate right-pad
    pos = jnp.arange(n_out)[:, None] * stride + jnp.arange(K)[None, :]   # (N, K)
    pos = jnp.minimum(pos, in_len - 1)
    onehot = (pos[..., None] == jnp.arange(in_len)).astype(w.dtype)      # (N, K, in_len)
    T = jnp.einsum("oik,nkl->onil", w, onehot)                           # (Cout, N, Cin, in_len)
    T = T.reshape(Cout * n_out, Cin * in_len)
    b_rows = jnp.repeat(b, n_out).reshape(Cout * n_out, 1)
    return T, b_rows, n_out


# ---------------------------------------------------------------------------
# Fused Pallas kernel: chain of small MXU matmuls on a 128-sample lane tile
# ---------------------------------------------------------------------------
def _make_fused_kernel(num_layers: int):
    def kernel(x_ref, *rest):
        # rest = (T_0, b_0, T_1, b_1, ..., o_ref)
        o_ref = rest[-1]
        h = x_ref[...]                                    # (Cin0*L0, TB), lanes = samples
        for l in range(num_layers):                       # static unroll
            T = rest[2 * l][...]                          # (Cout_l*N_l, Cin_l*len_l)
            bias = rest[2 * l + 1][...]                   # (Cout_l*N_l, 1)
            h = jnp.dot(T, h, preferred_element_type=jnp.float32) + bias
        o_ref[...] = h.astype(o_ref.dtype)
    return kernel


# ---------------------------------------------------------------------------
# ML_Conv1d forward (matches the PyTorch module semantics)
# ---------------------------------------------------------------------------
def ml_conv1d_forward(x, params, seq_len: int, kernel_size: int, stride: int,
                      tile_bc: int = 128):
    """x: (B, C, L) float32  ->  (B*C, N_final, out_channels)."""
    B, C, L = x.shape
    assert L == seq_len, "module assumes the configured seq_len matches the input"
    BC = B * C

    # Fold every layer into its dense operator (weights-only work, done once).
    ops = []
    cur_len = seq_len
    for (w, b) in params:
        T, b_rows, n_out = build_layer_operator(w, b, cur_len, stride)
        ops.append((T, b_rows))
        cur_len = n_out
    n_final = cur_len
    cout_final = params[-1][0].shape[0]
    r_final = cout_final * n_final

    # Samples on lanes: (L, BC), padded to a multiple of the 128-lane tile.
    xt = x.reshape(BC, L).T                               # (L, BC)
    bc_pad = pl.cdiv(BC, tile_bc) * tile_bc
    if bc_pad != BC:
        xt = jnp.pad(xt, ((0, 0), (0, bc_pad - BC)))
    num_tiles = bc_pad // tile_bc

    in_specs = [pl.BlockSpec((L, tile_bc), lambda i: (0, i))]
    args = [xt]
    flops = 0
    bytes_accessed = xt.size * 4 + r_final * bc_pad * 4
    for (T, b_rows) in ops:
        in_specs.append(pl.BlockSpec(T.shape, lambda i: (0, 0)))       # VMEM-resident
        in_specs.append(pl.BlockSpec(b_rows.shape, lambda i: (0, 0)))
        args += [T, b_rows]
        flops += 2 * T.shape[0] * T.shape[1] * tile_bc
        bytes_accessed += T.size * 4 + b_rows.size * 4
    flops *= num_tiles

    out = pl.pallas_call(
        _make_fused_kernel(len(params)),
        out_shape=jax.ShapeDtypeStruct((r_final, bc_pad), jnp.float32),
        grid=(num_tiles,),
        in_specs=in_specs,
        out_specs=pl.BlockSpec((r_final, tile_bc), lambda i: (0, i)),
        compiler_params=pltpu.CompilerParams(
            dimension_semantics=("parallel",)),
        cost_estimate=pl.CostEstimate(
            flops=flops, transcendentals=0, bytes_accessed=bytes_accessed),
    )(*args)

    out = out[:, :BC]                                     # (Cout_final*N_final, BC)
    out = out.reshape(cout_final, n_final, BC).transpose(2, 1, 0)
    return out                                            # (BC, N_final, Cout_final)


# ---------------------------------------------------------------------------
# Pure-JAX reference (for the correctness check)
# ---------------------------------------------------------------------------
def ml_conv1d_reference(x, params, seq_len: int, kernel_size: int, stride: int):
    B, C, L = x.shape
    h = x.reshape(B * C, 1, L)
    cur_len = seq_len
    for (w, b) in params:
        P = get_P(cur_len, kernel_size, stride)
        if P > 0:
            h = jnp.pad(h, ((0, 0), (0, 0), (0, P)), mode="edge")
        h = jax.lax.conv_general_dilated(
            h, w, window_strides=(stride,), padding="VALID",
            dimension_numbers=("NCH", "OIH", "NCH"),
        ) + b[None, :, None]
        cur_len = (cur_len + P - kernel_size) // stride + 1
    return h.transpose(0, 2, 1)


# ---------------------------------------------------------------------------
# Parameter init (deterministic; Conv1d-style uniform bounds)
# ---------------------------------------------------------------------------
def init_params(key, layers_num, hidden_channels, out_channels, kernel_size):
    cfgs = []
    for i in range(layers_num):
        if i == 0 and layers_num == 1:
            cfgs.append((1, out_channels))
        elif i == 0:
            cfgs.append((1, hidden_channels))
        elif i == layers_num - 1:
            cfgs.append((hidden_channels, out_channels))
        else:
            cfgs.append((hidden_channels, hidden_channels))

    params = []
    for (in_c, out_c) in cfgs:
        key, kw, kb = jax.random.split(key, 3)
        bound = 1.0 / math.sqrt(in_c * kernel_size)
        w = jax.random.uniform(kw, (out_c, in_c, kernel_size), jnp.float32, -bound, bound)
        b = jax.random.uniform(kb, (out_c,), jnp.float32, -bound, bound)
        params.append((w, b))
    return params


if __name__ == "__main__":
    key = jax.random.PRNGKey(0)

    configs = [
        # (B, C, L, layers_num, hidden_channels, out_channels, kernel_size, stride)
        (2, 4, 16, 2, 8, 8, 3, 2),    # tiny shape consistent with the module
        (4, 80, 16, 3, 8, 8, 3, 2),   # BC=320 -> 3 lane tiles (exercises grid + padding)
    ]
    for (B, C, L, layers_num, hidden, out_c, K, stride) in configs:
        key, kx, kp = jax.random.split(key, 3)
        x = jax.random.normal(kx, (B, C, L), dtype=jnp.float32)
        params = init_params(kp, layers_num, hidden, out_c, K)

        y = ml_conv1d_forward(x, params, seq_len=L, kernel_size=K, stride=stride)
        y = jax.block_until_ready(y)

        y_ref = ml_conv1d_reference(x, params, seq_len=L, kernel_size=K, stride=stride)
        assert y.shape == y_ref.shape, (y.shape, y_ref.shape)
        assert jnp.allclose(y, y_ref, atol=1e-5, rtol=1e-5), \
            ("mismatch", float(jnp.max(jnp.abs(y - y_ref))))

    print("KERNEL_OK")
</pallas_src>

<mosaic_0001>
module attributes {stable_mosaic.version = 11 : i64} {
  func.func @kernel(%arg0: i32, %arg1: memref<16x128xf32, #tpu.memory_space<vmem>>, %arg2: memref<64x16xf32, #tpu.memory_space<vmem>>, %arg3: memref<64x1xf32, #tpu.memory_space<vmem>>, %arg4: memref<32x64xf32, #tpu.memory_space<vmem>>, %arg5: memref<32x1xf32, #tpu.memory_space<vmem>>, %arg6: memref<32x128xf32, #tpu.memory_space<vmem>>) attributes {dimension_semantics = [#tpu.dimension_semantics<parallel>], iteration_bounds = array<i64: 1>, scalar_prefetch = 0 : i64, scratch_operands = 0 : i64, tpu.core_type = #tpu.core_type<tc>, window_params = [{transform_indices = @transform_0, window_bounds = array<i64: 16, 128>}, {pipeline_mode = #tpu.pipeline_mode<synchronous>, transform_indices = @transform_1, window_bounds = array<i64: 64, 16>}, {pipeline_mode = #tpu.pipeline_mode<synchronous>, transform_indices = @transform_2, window_bounds = array<i64: 64, 1>}, {pipeline_mode = #tpu.pipeline_mode<synchronous>, transform_indices = @transform_3, window_bounds = array<i64: 32, 64>}, {pipeline_mode = #tpu.pipeline_mode<synchronous>, transform_indices = @transform_4, window_bounds = array<i64: 32, 1>}, {transform_indices = @transform_5, window_bounds = array<i64: 32, 128>}]} {
    %c0 = arith.constant 0 : index
    %c0_0 = arith.constant 0 : index
    %0 = vector.load %arg1[%c0, %c0_0] : memref<16x128xf32, #tpu.memory_space<vmem>>, vector<16x128xf32>
    %c0_1 = arith.constant 0 : index
    %c0_2 = arith.constant 0 : index
    %1 = vector.load %arg2[%c0_1, %c0_2] : memref<64x16xf32, #tpu.memory_space<vmem>>, vector<64x16xf32>
    %c0_3 = arith.constant 0 : index
    %c0_4 = arith.constant 0 : index
    %2 = vector.load %arg3[%c0_3, %c0_4] : memref<64x1xf32, #tpu.memory_space<vmem>>, vector<64x1xf32>
    %cst = arith.constant dense<0.000000e+00> : vector<64x128xf32>
    %3 = tpu.matmul %1, %0, %cst {dimension_numbers = #tpu.dot_dimension_numbers<[1], [0], [0], [1], [0, 0, 1, 1], [], []>} : vector<64x16xf32>, vector<16x128xf32>, vector<64x128xf32> -> vector<64x128xf32>
    %4 = vector.broadcast %2 : vector<64x1xf32> to vector<64x128xf32>
    %5 = arith.addf %3, %4 : vector<64x128xf32>
    %c0_5 = arith.constant 0 : index
    %c0_6 = arith.constant 0 : index
    %6 = vector.load %arg4[%c0_5, %c0_6] : memref<32x64xf32, #tpu.memory_space<vmem>>, vector<32x64xf32>
    %c0_7 = arith.constant 0 : index
    %c0_8 = arith.constant 0 : index
    %7 = vector.load %arg5[%c0_7, %c0_8] : memref<32x1xf32, #tpu.memory_space<vmem>>, vector<32x1xf32>
    %cst_9 = arith.constant dense<0.000000e+00> : vector<32x128xf32>
    %8 = tpu.matmul %6, %5, %cst_9 {dimension_numbers = #tpu.dot_dimension_numbers<[1], [0], [0], [1], [0, 0, 1, 1], [], []>} : vector<32x64xf32>, vector<64x128xf32>, vector<32x128xf32> -> vector<32x128xf32>
    %9 = vector.broadcast %7 : vector<32x1xf32> to vector<32x128xf32>
    %10 = arith.addf %8, %9 : vector<32x128xf32>
    %c0_10 = arith.constant 0 : index
    %c0_11 = arith.constant 0 : index
    %11 = vector.load %arg6[%c0_10, %c0_11] : memref<32x128xf32, #tpu.memory_space<vmem>>, vector<32x128xf32>
    tpu.vector_store %arg6[%c0_10, %c0_11], %10 {strides = array<i32>} : memref<32x128xf32, #tpu.memory_space<vmem>>, vector<32x128xf32>,
    return
  }
  func.func @transform_0(%arg0: i32) -> (i32, i32) {
    %c0_i32 = arith.constant 0 : i32
    %c0_i32_0 = arith.constant 0 : i32
    return %c0_i32, %arg0 : i32, i32
  }
  func.func @transform_1(%arg0: i32) -> (i32, i32) {
    %c0_i32 = arith.constant 0 : i32
    %c0_i32_0 = arith.constant 0 : i32
    %c0_i32_1 = arith.constant 0 : i32
    return %c0_i32, %c0_i32_0 : i32, i32
  }
  func.func @transform_2(%arg0: i32) -> (i32, i32) {
    %c0_i32 = arith.constant 0 : i32
    %c0_i32_0 = arith.constant 0 : i32
    %c0_i32_1 = arith.constant 0 : i32
    return %c0_i32, %c0_i32_0 : i32, i32
  }
  func.func @transform_3(%arg0: i32) -> (i32, i32) {
    %c0_i32 = arith.constant 0 : i32
    %c0_i32_0 = arith.constant 0 : i32
    %c0_i32_1 = arith.constant 0 : i32
    return %c0_i32, %c0_i32_0 : i32, i32
  }
  func.func @transform_4(%arg0: i32) -> (i32, i32) {
    %c0_i32 = arith.constant 0 : i32
    %c0_i32_0 = arith.constant 0 : i32
    %c0_i32_1 = arith.constant 0 : i32
    return %c0_i32, %c0_i32_0 : i32, i32
  }
  func.func @transform_5(%arg0: i32) -> (i32, i32) {
    %c0_i32 = arith.constant 0 : i32
    %c0_i32_0 = arith.constant 0 : i32
    return %c0_i32, %arg0 : i32, i32
  }
}

</mosaic_0001>

<llo_original>
// kernel: tpu_custom_call.1
$region0: #{tpu_custom_call.1}
  #allocation0 [shape = 'u32[]', space=smem, size = 0x4, offset = 0x4, fixed_abs, tag = 'smem constant byte address 0x4 - core index']
  #allocation1 [shape = 'u32[144,128]{1,0:T(1,128)}', space=vmem, size = 0x12000, scoped, tag = 'internal scratch']
  %s0 = inlined_call_operand.vmem [shape: f32[16,128], index: 0, kind: input, shape index: {}]
  %s1 = inlined_call_operand.vmem [shape: f32[64,16], index: 1, kind: input, shape index: {}]
  %s2 = inlined_call_operand.vmem [shape: f32[64,1], index: 2, kind: input, shape index: {}]
  %s3 = inlined_call_operand.vmem [shape: f32[32,64], index: 3, kind: input, shape index: {}]
  %s4 = inlined_call_operand.vmem [shape: f32[32,1], index: 4, kind: input, shape index: {}]
  %s5 = inlined_call_operand.hbm [shape: f32[32,128], index: 5, kind: output, shape index: {}]
  %s6 = sld [smem:[#allocation0]]
  $region30: #{tpu_custom_call.1} parent=0
    _
  %s8 = ssub.s32 1, %s6
  %s9 = scalar_select 0, %s8, %s6
  $region1: #{tpu_custom_call.1} parent=0
    #allocation2 [shape = 'u8[16384]{0}', space=vmem, size = 0x4000, scoped, tag = 'output window, operand 0, single buffered']
    #allocation3 [shape = 's32[1]{0}', space=sflag, size = 0x4, scoped, tag = 'scoped memory for tpu_custom_call.1']
    %10 = vsyncpa [#allocation3], 0
    // Predicated region
    $region2: #{tpu_custom_call.1} parent=1 // pred_check
      _
    $region3: #{tpu_custom_call.1} parent=1 // pred_check_branch
      %12 = sbr.rel (0) target = $region5
    $region4: #{tpu_custom_call.1} parent=1 // pred_region
      _
    $region5: #{tpu_custom_call.1} parent=1 // pred_fallthru
      _
    // Predicated region
    $region6: #{tpu_custom_call.1} parent=1 // pred_check
      _
    $region7: #{tpu_custom_call.1} parent=1 // pred_check_branch
      %14 = sbr.rel (0) target = $region9
    $region8: #{tpu_custom_call.1} parent=1 // pred_region
      _
    $region9: #{tpu_custom_call.1} parent=1 // pred_fallthru
      _
    // Predicated region
    $region10: #{tpu_custom_call.1} parent=1 // pred_check
      _
    $region11: #{tpu_custom_call.1} parent=1 // pred_check_branch
      %16 = sbr.rel (0) target = $region13
    $region12: #{tpu_custom_call.1} parent=1 // pred_region
      _
    $region13: #{tpu_custom_call.1} parent=1 // pred_fallthru
      _
    // Predicated region
    $region14: #{tpu_custom_call.1} parent=1 // pred_check
      _
    $region15: #{tpu_custom_call.1} parent=1 // pred_check_branch
      %18 = sbr.rel (0) target = $region17
    $region16: #{tpu_custom_call.1} parent=1 // pred_region
      _
    $region17: #{tpu_custom_call.1} parent=1 // pred_fallthru
      _
    // Predicated region
    $region18: #{tpu_custom_call.1} parent=1 // pred_check
      _
    $region19: #{tpu_custom_call.1} parent=1 // pred_check_branch
      %20 = sbr.rel (0) target = $region21
    $region20: #{tpu_custom_call.1} parent=1 // pred_region
      _
    $region21: #{tpu_custom_call.1} parent=1 // pred_fallthru
      _
    %v21 = vld [vmem:[%s0] sm:$0xff]
    %v22 = vld [vmem:[%s0 + $0x8] sm:$0xff]
    %v23 = vld [vmem:[%s1] sm:$0xff]
    %v24 = vld [vmem:[%s1 + $0x8] sm:$0xff]
    %v25 = vld [vmem:[%s1 + $0x10] sm:$0xff]
    %v26 = vld [vmem:[%s1 + $0x18] sm:$0xff]
    %v27 = vld [vmem:[%s1 + $0x20] sm:$0xff]
    %v28 = vld [vmem:[%s1 + $0x28] sm:$0xff]
    %v29 = vld [vmem:[%s1 + $0x30] sm:$0xff]
    %v30 = vld [vmem:[%s1 + $0x38] sm:$0xff]
    %v31 = vld [vmem:[%s2] sm:$0xff]
    %v32 = vld [vmem:[%s2 + $0x8] sm:$0xff]
    %v33 = vld [vmem:[%s2 + $0x10] sm:$0xff]
    %v34 = vld [vmem:[%s2 + $0x18] sm:$0xff]
    %v35 = vld [vmem:[%s2 + $0x20] sm:$0xff]
    %v36 = vld [vmem:[%s2 + $0x28] sm:$0xff]
    %v37 = vld [vmem:[%s2 + $0x30] sm:$0xff]
    %v38 = vld [vmem:[%s2 + $0x38] sm:$0xff]
    %40 = vset.pattern.permute.xlu0 0
    %41 = vperm.xlu0 %40, %v31
    %v42 = vpop.permute.xlu0 %41
    %45 = vset.pattern.permute.xlu0 0
    %46 = vperm.xlu0 %45, %v32
    %v47 = vpop.permute.xlu0 %46
    %50 = vset.pattern.permute.xlu0 0
    %51 = vperm.xlu0 %50, %v33
    %v52 = vpop.permute.xlu0 %51
    %55 = vset.pattern.permute.xlu0 0
    %56 = vperm.xlu0 %55, %v34
    %v57 = vpop.permute.xlu0 %56
    %60 = vset.pattern.permute.xlu0 0
    %61 = vperm.xlu0 %60, %v35
    %v62 = vpop.permute.xlu0 %61
    %65 = vset.pattern.permute.xlu0 0
    %66 = vperm.xlu0 %65, %v36
    %v67 = vpop.permute.xlu0 %66
    %70 = vset.pattern.permute.xlu0 0
    %71 = vperm.xlu0 %70, %v37
    %v72 = vpop.permute.xlu0 %71
    %75 = vset.pattern.permute.xlu0 0
    %76 = vperm.xlu0 %75, %v38
    %v77 = vpop.permute.xlu0 %76
    %vm79 = vcmask 130048
    %v81 = vsel %vm79, %v23, 0
    %v84 = vsel %vm79, %v24, 0
    %v87 = vsel %vm79, %v25, 0
    %v90 = vsel %vm79, %v26, 0
    %v93 = vsel %vm79, %v27, 0
    %v96 = vsel %vm79, %v28, 0
    %v99 = vsel %vm79, %v29, 0
    %v102 = vsel %vm79, %v30, 0
    %104 = vmatprep.subr.mxu0 0.0
    %105 = vmatpush1.msra.mxu0 %v21
    %106 = vmatprep.subr.mxu0 0.0
    %107 = vmatpush1.msra.mxu0 %v22
    %108 = vmatprep.subr.mxu0 0.0
    %109 = vmatpush1.msra.mxu0 0.0
    %110 = vmatprep.subr.mxu0 0.0
    %111 = vmatpush1.msra.mxu0 0.0
    %112 = vmatprep.subr.mxu0 0.0
    %113 = vmatpush1.msra.mxu0 0.0
    %114 = vmatprep.subr.mxu0 0.0
    %115 = vmatpush1.msra.mxu0 0.0
    %116 = vmatprep.subr.mxu0 0.0
    %117 = vmatpush1.msra.mxu0 0.0
    %118 = vmatprep.subr.mxu0 0.0
    %119 = vmatpush1.msra.mxu0 0.0
    %120 = vmatprep.subr.mxu0 0.0
    %121 = vmatpush1.msra.mxu0 0.0
    %122 = vmatprep.subr.mxu0 0.0
    %123 = vmatpush1.msra.mxu0 0.0
    %124 = vmatprep.subr.mxu0 0.0
    %125 = vmatpush1.msra.mxu0 0.0
    %126 = vmatprep.subr.mxu0 0.0
    %127 = vmatpush1.msra.mxu0 0.0
    %128 = vmatprep.subr.mxu0 0.0
    %129 = vmatpush1.msra.mxu0 0.0
    %130 = vmatprep.subr.mxu0 0.0
    %131 = vmatpush1.msra.mxu0 0.0
    %132 = vmatprep.subr.mxu0 0.0
    %133 = vmatpush1.msra.mxu0 0.0
    %134 = vmatprep.subr.mxu0 0.0
    %135 = vmatpush1.msra.mxu0 0.0
    %136 = vmatprep.subr.mxu0 0.0
    %137 = vmatpush1.msra.mxu0 0.0
    %138 = vmatprep.subr.mxu0 0.0
    %139 = vmatpush1.msra.mxu0 0.0
    %140 = vmatprep.subr.mxu0 0.0
    %141 = vmatpush1.msra.mxu0 0.0
    %142 = vmatprep.subr.mxu0 0.0
    %143 = vmatpush1.msra.mxu0 0.0
    %144 = vmatprep.subr.mxu0 0.0
    %145 = vmatpush1.msra.mxu0 0.0
    %146 = vmatprep.subr.mxu0 0.0
    %147 = vmatpush1.msra.mxu0 0.0
    %148 = vmatprep.subr.mxu0 0.0
    %149 = vmatpush1.msra.mxu0 0.0
    %150 = vmatprep.subr.mxu0 0.0
    %151 = vmatpush1.msra.mxu0 0.0
    %152 = vmatprep.subr.mxu0 0.0
    %153 = vmatpush1.msra.mxu0 0.0
    %154 = vmatprep.subr.mxu0 0.0
    %155 = vmatpush1.msra.mxu0 0.0
    %156 = vmatprep.subr.mxu0 0.0
    %157 = vmatpush1.msra.mxu0 0.0
    %158 = vmatprep.subr.mxu0 0.0
    %159 = vmatpush1.msra.mxu0 0.0
    %160 = vmatprep.subr.mxu0 0.0
    %161 = vmatpush1.msra.mxu0 0.0
    %162 = vmatprep.subr.mxu0 0.0
    %163 = vmatpush1.msra.mxu0 0.0
    %164 = vmatprep.subr.mxu0 0.0
    %165 = vmatpush1.msra.mxu0 0.0
    %166 = vmatprep.subr.mxu0 0.0
    %167 = vmatpush1.msra.mxu0 0.0
    %168 = vmatprep.mubr.f32.mxu0 0.0
    %169 = vmatmul.mubr.f32.gmra.mrb[0].mxu0 %v81
    %v170 = vpop.f32.mrb[0].mxu0
    %v171 = vadd.f32 %v42, %v170
    %v172 = vpop.f32.mrb[0].mxu0
    %173 = vmatprep.mubr.f32.mxu0 0.0
    %174 = vmatmul.mubr.f32.gmra.mrb[0].mxu0 %v84
    %v175 = vpop.f32.mrb[0].mxu0
    %v176 = vadd.f32 %v47, %v175
    %v177 = vpop.f32.mrb[0].mxu0
    %178 = vmatprep.mubr.f32.mxu0 0.0
    %179 = vmatmul.mubr.f32.gmra.mrb[0].mxu0 %v87
    %v180 = vpop.f32.mrb[0].mxu0
    %v181 = vadd.f32 %v52, %v180
    %v182 = vpop.f32.mrb[0].mxu0
    %183 = vmatprep.mubr.f32.mxu0 0.0
    %184 = vmatmul.mubr.f32.gmra.mrb[0].mxu0 %v90
    %v185 = vpop.f32.mrb[0].mxu0
    %v186 = vadd.f32 %v57, %v185
    %v187 = vpop.f32.mrb[0].mxu0
    %188 = vmatprep.mubr.f32.mxu0 0.0
    %189 = vmatmul.mubr.f32.gmra.mrb[0].mxu0 %v93
    %v190 = vpop.f32.mrb[0].mxu0
    %v191 = vadd.f32 %v62, %v190
    %v192 = vpop.f32.mrb[0].mxu0
    %193 = vmatprep.mubr.f32.mxu0 0.0
    %194 = vmatmul.mubr.f32.gmra.mrb[0].mxu0 %v96
    %v195 = vpop.f32.mrb[0].mxu0
    %v196 = vadd.f32 %v67, %v195
    %v197 = vpop.f32.mrb[0].mxu0
    %198 = vmatprep.mubr.f32.mxu0 0.0
    %199 = vmatmul.mubr.f32.gmra.mrb[0].mxu0 %v99
    %v200 = vpop.f32.mrb[0].mxu0
    %v201 = vadd.f32 %v72, %v200
    %v202 = vpop.f32.mrb[0].mxu0
    %203 = vmatprep.mubr.f32.mxu0 0.0
    %204 = vmatmul.mubr.f32.gmra.mrb[0].mxu0 %v102
    %v205 = vpop.f32.mrb[0].mxu0
    %v206 = vadd.f32 %v77, %v205
    %v207 = vpop.f32.mrb[0].mxu0
    %208 = vdwg.mxu0
    %v209 = vld [vmem:[%s3] sm:$0xff]
    %v210 = vld [vmem:[%s3 + $0x8] sm:$0xff]
    %v211 = vld [vmem:[%s3 + $0x10] sm:$0xff]
    %v212 = vld [vmem:[%s3 + $0x18] sm:$0xff]
    %v213 = vld [vmem:[%s4] sm:$0xff]
    %v214 = vld [vmem:[%s4 + $0x8] sm:$0xff]
    %v215 = vld [vmem:[%s4 + $0x10] sm:$0xff]
    %v216 = vld [vmem:[%s4 + $0x18] sm:$0xff]
    %218 = vset.pattern.permute.xlu0 0
    %219 = vperm.xlu0 %218, %v213
    %v220 = vpop.permute.xlu0 %219
    %223 = vset.pattern.permute.xlu0 0
    %224 = vperm.xlu0 %223, %v214
    %v225 = vpop.permute.xlu0 %224
    %228 = vset.pattern.permute.xlu0 0
    %229 = vperm.xlu0 %228, %v215
    %v230 = vpop.permute.xlu0 %229
    %233 = vset.pattern.permute.xlu0 0
    %234 = vperm.xlu0 %233, %v216
    %v235 = vpop.permute.xlu0 %234
    %vm237 = vcmask 523264
    %v239 = vsel %vm237, %v209, 0
    %v242 = vsel %vm237, %v210, 0
    %v245 = vsel %vm237, %v211, 0
    %v248 = vsel %vm237, %v212, 0
    %250 = vmatprep.subr.mxu0 0.0
    %251 = vmatpush1.msra.mxu0 %v171
    %252 = vmatprep.subr.mxu0 0.0
    %253 = vmatpush1.msra.mxu0 %v176
    %254 = vmatprep.subr.mxu0 0.0
    %255 = vmatpush1.msra.mxu0 %v181
    %256 = vmatprep.subr.mxu0 0.0
    %257 = vmatpush1.msra.mxu0 %v186
    %258 = vmatprep.subr.mxu0 0.0
    %259 = vmatpush1.msra.mxu0 %v191
    %260 = vmatprep.subr.mxu0 0.0
    %261 = vmatpush1.msra.mxu0 %v196
    %262 = vmatprep.subr.mxu0 0.0
    %263 = vmatpush1.msra.mxu0 %v201
    %264 = vmatprep.subr.mxu0 0.0
    %265 = vmatpush1.msra.mxu0 %v206
    %266 = vmatprep.subr.mxu0 0.0
    %267 = vmatpush1.msra.mxu0 0.0
    %268 = vmatprep.subr.mxu0 0.0
    %269 = vmatpush1.msra.mxu0 0.0
    %270 = vmatprep.subr.mxu0 0.0
    %271 = vmatpush1.msra.mxu0 0.0
    %272 = vmatprep.subr.mxu0 0.0
    %273 = vmatpush1.msra.mxu0 0.0
    %274 = vmatprep.subr.mxu0 0.0
    %275 = vmatpush1.msra.mxu0 0.0
    %276 = vmatprep.subr.mxu0 0.0
    %277 = vmatpush1.msra.mxu0 0.0
    %278 = vmatprep.subr.mxu0 0.0
    %279 = vmatpush1.msra.mxu0 0.0
    %280 = vmatprep.subr.mxu0 0.0
    %281 = vmatpush1.msra.mxu0 0.0
    %282 = vmatprep.subr.mxu0 0.0
    %283 = vmatpush1.msra.mxu0 0.0
    %284 = vmatprep.subr.mxu0 0.0
    %285 = vmatpush1.msra.mxu0 0.0
    %286 = vmatprep.subr.mxu0 0.0
    %287 = vmatpush1.msra.mxu0 0.0
    %288 = vmatprep.subr.mxu0 0.0
    %289 = vmatpush1.msra.mxu0 0.0
    %290 = vmatprep.subr.mxu0 0.0
    %291 = vmatpush1.msra.mxu0 0.0
    %292 = vmatprep.subr.mxu0 0.0
    %293 = vmatpush1.msra.mxu0 0.0
    %294 = vmatprep.subr.mxu0 0.0
    %295 = vmatpush1.msra.mxu0 0.0
    %296 = vmatprep.subr.mxu0 0.0
    %297 = vmatpush1.msra.mxu0 0.0
    %298 = vmatprep.subr.mxu0 0.0
    %299 = vmatpush1.msra.mxu0 0.0
    %300 = vmatprep.subr.mxu0 0.0
    %301 = vmatpush1.msra.mxu0 0.0
    %302 = vmatprep.subr.mxu0 0.0
    %303 = vmatpush1.msra.mxu0 0.0
    %304 = vmatprep.subr.mxu0 0.0
    %305 = vmatpush1.msra.mxu0 0.0
    %306 = vmatprep.subr.mxu0 0.0
    %307 = vmatpush1.msra.mxu0 0.0
    %308 = vmatprep.subr.mxu0 0.0
    %309 = vmatpush1.msra.mxu0 0.0
    %310 = vmatprep.subr.mxu0 0.0
    %311 = vmatpush1.msra.mxu0 0.0
    %312 = vmatprep.subr.mxu0 0.0
    %313 = vmatpush1.msra.mxu0 0.0
    %314 = vmatprep.mubr.f32.mxu0 0.0
    %315 = vmatmul.mubr.f32.gmra.mrb[0].mxu0 %v239
    %v316 = vpop.f32.mrb[0].mxu0
    %v317 = vadd.f32 %v220, %v316
    %v318 = vpop.f32.mrb[0].mxu0
    %319 = vmatprep.mubr.f32.mxu0 0.0
    %320 = vmatmul.mubr.f32.gmra.mrb[0].mxu0 %v242
    %v321 = vpop.f32.mrb[0].mxu0
    %v322 = vadd.f32 %v225, %v321
    %v323 = vpop.f32.mrb[0].mxu0
    %324 = vmatprep.mubr.f32.mxu0 0.0
    %325 = vmatmul.mubr.f32.gmra.mrb[0].mxu0 %v245
    %v326 = vpop.f32.mrb[0].mxu0
    %v327 = vadd.f32 %v230, %v326
    %v328 = vpop.f32.mrb[0].mxu0
    %329 = vmatprep.mubr.f32.mxu0 0.0
    %330 = vmatmul.mubr.f32.gmra.mrb[0].mxu0 %v248
    %v331 = vpop.f32.mrb[0].mxu0
    %v332 = vadd.f32 %v235, %v331
    %v333 = vpop.f32.mrb[0].mxu0
    %334 = vdwg.mxu0
    %335 = vst [vmem:[#allocation2] sm:$0xff] %v317
    %336 = vst [vmem:[#allocation2 + $0x8] sm:$0xff] %v322
    %337 = vst [vmem:[#allocation2 + $0x10] sm:$0xff] %v327
    %338 = vst [vmem:[#allocation2 + $0x18] sm:$0xff] %v332
    // Predicated region
    $region22: #{tpu_custom_call.1} parent=1 // pred_check
      _
    $region23: #{tpu_custom_call.1} parent=1 // pred_check_branch
      %340 = sbr.rel (0) target = $region25
    $region24: #{tpu_custom_call.1} parent=1 // pred_region
      %s342 = ssub.s32 512, 512
      %343 = vsyncadd [#allocation3], %s342
      %s344 = sshll.u32 [#allocation2], 4
      %s345 = int_to_ptr.vmem [resolvable:$true] %s344
      %350 = dma.vmem_to_hbm [thread:$0]  %s345, 512, %s5, [#allocation3], 128, 128, 8
    $region25: #{tpu_custom_call.1} parent=1 // pred_fallthru
      _
    // Predicated region
    $region26: #{tpu_custom_call.1} parent=1 // pred_check
      _
    $region27: #{tpu_custom_call.1} parent=1 // pred_check_branch
      %352 = sbr.rel (0) target = $region29
    $region28: #{tpu_custom_call.1} parent=1 // pred_region
      %353 = dma.done [#allocation3], 512
    $region29: #{tpu_custom_call.1} parent=1 // pred_fallthru
      _
    %354 = vsyncpa [#allocation3], 1

</llo_original>
